<compile_context>
chip_gen: v5e
topology: v5e:2x2
jax: 0.10.0
libtpu: 0.0.40
codegen_flags: <defaults>
</compile_context>

<pallas_src>
import math

import jax
import jax.numpy as jnp
from jax.experimental import pallas as pl
from jax.experimental.pallas import tpu as pltpu


def _round_up(x, m):
    return ((x + m - 1) // m) * m


def _cdiv(a, b):
    return (a + b - 1) // b


def _card_embedding_kernel(flat_ref, w_ref, hi_ref, lo_ref, out_ref):
    """One grid step = tile_b whole batch elements (tile_r = tile_b * in_dim rows).

    flat_ref: (tile_r, 1)   int32  flat table-row index per output row
    w_ref:    (tile_r, 1)   f32    post-matmul scale (x for non-card rows, 1.0 for card rows)
    hi_ref:   (k_pad, emb)  bf16   high bf16 half of the flat card table (+ all-ones row)
    lo_ref:   (k_pad, emb)  bf16   low  bf16 residual of the same table
    out_ref:  (tile_r, emb) f32
    """
    tile_r = flat_ref.shape[0]
    k_pad = hi_ref.shape[0]

    # 0/1 one-hot selector (exactly representable in bf16), built from the
    # precomputed per-row flat index: no per-column logic in the kernel and no
    # x-weights inside the matmul, so both MXU passes are exact row gathers.
    k_iota = jax.lax.broadcasted_iota(jnp.int32, (tile_r, k_pad), 1)
    sel = jnp.where(k_iota == flat_ref[...], 1.0, 0.0).astype(jnp.bfloat16)

    # hi/lo bf16 split of the f32 table: two bf16 MXU passes, f32 accumulate.
    acc = jnp.dot(sel, hi_ref[...], preferred_element_type=jnp.float32)
    acc = acc + jnp.dot(sel, lo_ref[...], preferred_element_type=jnp.float32)

    # Non-card rows selected the all-ones row, so scaling by x reproduces the
    # "ones * x" broadcast; card rows scale by exactly 1.0 (a no-op).
    out_ref[...] = acc * w_ref[...]


def _pick_tiling(batch, in_dim, target_rows):
    """Whole-batch-element tiles; tile_r = tile_b*in_dim kept a multiple of 8."""
    align = 8 // math.gcd(in_dim, 8)
    cap_b = max(align, ((max(target_rows, 8) // in_dim) // align) * align)
    if batch <= align:
        return align, 1
    n_tiles = max(2, _cdiv(batch, cap_b))      # >=2 grid steps: lets v7x use both TCs
    if n_tiles % 2:
        n_tiles += 1                           # even step count splits cleanly across 2 TCs
    tile_b = _round_up(_cdiv(batch, n_tiles), align)
    n_tiles = _cdiv(batch, tile_b)             # drop tiles that would be pure padding
    return tile_b, n_tiles


def card_embedding_forward(x, card_buffer, *, range_min, range_max, in_dim, emb_dim,
                           target_rows=2048):
    """x: (B, in_dim) or (B, 1, in_dim); card_buffer: (npos, ncards, emb_dim) f32."""
    x2 = x[:, 0, :] if x.ndim == 3 else x
    x2 = x2.astype(jnp.float32)
    batch = x2.shape[0]
    npos, ncards, emb_cb = card_buffer.shape
    assert emb_cb == emb_dim and range_max - range_min == npos

    ones_row = npos * ncards                        # index of the all-ones row
    k_pad = _round_up(ones_row + 1, 128)            # lane-/MXU-aligned contraction size

    # Flat table (+ all-ones row), split into hi/lo bf16 halves so two exact bf16
    # MXU gathers reconstruct the f32 values to ~2^-16 relative accuracy
    # (exact when the real card features are 0/1-valued).
    tbl = jnp.zeros((k_pad, emb_dim), jnp.float32)
    tbl = tbl.at[:ones_row, :].set(card_buffer.astype(jnp.float32).reshape(ones_row, emb_dim))
    tbl = tbl.at[ones_row, :].set(1.0)
    tbl_hi = tbl.astype(jnp.bfloat16)
    tbl_lo = (tbl - tbl_hi.astype(jnp.float32)).astype(jnp.bfloat16)

    tile_b, n_tiles = _pick_tiling(batch, in_dim, target_rows)
    tile_r = tile_b * in_dim
    batch_pad = tile_b * n_tiles
    rows_pad = batch_pad * in_dim

    # Precompute per-row flat index + post-matmul weight on tiny data (removes the
    # in-kernel column logic). Mask non-card lanes before the int cast and clamp
    # ids so invalid ids never read outside their position's table rows.
    x_pad = jnp.pad(x2, ((0, batch_pad - batch), (0, 0)))
    col = jnp.arange(in_dim, dtype=jnp.int32)
    is_card = (col >= range_min) & (col < range_max)                      # (in_dim,)
    base = (col - range_min) * ncards
    ids = jnp.clip(jnp.where(is_card[None, :], x_pad, 0.0).astype(jnp.int32), 0, ncards - 1)
    flat = jnp.where(is_card[None, :], base[None, :] + ids, ones_row).astype(jnp.int32)
    weight = jnp.where(is_card[None, :], jnp.float32(1.0), x_pad)

    out = pl.pallas_call(
        _card_embedding_kernel,
        out_shape=jax.ShapeDtypeStruct((rows_pad, emb_dim), jnp.float32),
        grid=(n_tiles,),
        in_specs=[
            pl.BlockSpec((tile_r, 1), lambda i: (i, 0)),          # per-row flat index
            pl.BlockSpec((tile_r, 1), lambda i: (i, 0)),          # per-row weight
            pl.BlockSpec((k_pad, emb_dim), lambda i: (0, 0)),     # table hi (VMEM-resident)
            pl.BlockSpec((k_pad, emb_dim), lambda i: (0, 0)),     # table lo (VMEM-resident)
        ],
        out_specs=pl.BlockSpec((tile_r, emb_dim), lambda i: (i, 0)),
        compiler_params=pltpu.CompilerParams(
            dimension_semantics=("parallel",),
            vmem_limit_bytes=32 * 1024 * 1024),
    )(flat.reshape(rows_pad, 1), weight.reshape(rows_pad, 1), tbl_hi, tbl_lo)

    out = out.reshape(batch_pad, in_dim, emb_dim)
    return out[:batch] if batch_pad != batch else out


def _reference_forward(x, card_buffer, *, range_min, range_max, in_dim, emb_dim):
    """Pure-JAX transcription of the PyTorch forward, for verification."""
    if x.ndim == 2:
        x = x[:, None, :]
    batch = x.shape[0]
    npos = card_buffer.shape[0]
    xs = x[:, 0, range_min:range_max].astype(jnp.int32)          # (B, npos)
    out = jnp.ones((batch, in_dim, emb_dim), jnp.float32)
    gathered = card_buffer[jnp.arange(npos)[None, :], xs]        # (B, npos, emb_dim)
    out = out.at[:, range_min:range_max, :].set(gathered)
    out = out.at[:, :range_min, :].multiply(
        jnp.swapaxes(x[:, :, :range_min], 1, 2).astype(jnp.float32))
    out = out.at[:, range_max:in_dim, :].multiply(
        jnp.swapaxes(x[:, :, range_max:in_dim], 1, 2).astype(jnp.float32))
    return out


if __name__ == "__main__":
    # Small, self-consistent shapes: 8 card slots (pos buffer is length 8).
    B, IN_DIM, EMB = 2, 16, 26
    RMIN, RMAX = 4, 12
    NPOS, NCARDS = 8, 52

    key = jax.random.PRNGKey(0)
    k_cb, k_x, k_ids, k_x2, k_ids2 = jax.random.split(key, 5)

    # Synthetic "Card.int_to_emb" table: (8, 52, 26).
    card_buffer = jax.random.normal(k_cb, (NPOS, NCARDS, EMB), jnp.float32)

    # x: (B, 1, in_dim); card-slot columns hold integer card ids in [0, 52).
    x = jax.random.normal(k_x, (B, 1, IN_DIM), jnp.float32)
    card_ids = jax.random.randint(k_ids, (B, 1, RMAX - RMIN), 0, NCARDS)
    x = x.at[:, :, RMIN:RMAX].set(card_ids.astype(jnp.float32))

    out = card_embedding_forward(
        x, card_buffer, range_min=RMIN, range_max=RMAX, in_dim=IN_DIM, emb_dim=EMB)
    out = jax.block_until_ready(out)
    ref = _reference_forward(
        x, card_buffer, range_min=RMIN, range_max=RMAX, in_dim=IN_DIM, emb_dim=EMB)
    assert out.shape == (B, IN_DIM, EMB)
    # hi/lo bf16 split reconstructs the f32 table to ~2^-16 relative accuracy
    # (exact for real 0/1 card features); x-scaled (non-card) rows are exact f32.
    assert jnp.allclose(out, ref, atol=1e-4, rtol=1e-5), "mismatch vs reference (small)"

    # Larger, odd batch (2-D input path): exercises multi-tile grid + batch padding.
    B2 = 63
    x_big = jax.random.normal(k_x2, (B2, IN_DIM), jnp.float32)
    ids_big = jax.random.randint(k_ids2, (B2, RMAX - RMIN), 0, NCARDS)
    x_big = x_big.at[:, RMIN:RMAX].set(ids_big.astype(jnp.float32))
    out_big = jax.block_until_ready(card_embedding_forward(
        x_big, card_buffer, range_min=RMIN, range_max=RMAX, in_dim=IN_DIM, emb_dim=EMB))
    ref_big = _reference_forward(
        x_big, card_buffer, range_min=RMIN, range_max=RMAX, in_dim=IN_DIM, emb_dim=EMB)
    assert jnp.allclose(out_big, ref_big, atol=1e-4, rtol=1e-5), "mismatch vs reference (tiled)"

    print("KERNEL_OK")
</pallas_src>

<mosaic_0001>
module attributes {stable_mosaic.version = 11 : i64} {
  func.func @_card_embedding_kernel(%arg0: i32, %arg1: memref<16x1xi32, #tpu.memory_space<vmem>>, %arg2: memref<16x1xf32, #tpu.memory_space<vmem>>, %arg3: memref<512x26xbf16, #tpu.memory_space<vmem>>, %arg4: memref<512x26xbf16, #tpu.memory_space<vmem>>, %arg5: memref<16x26xf32, #tpu.memory_space<vmem>>) attributes {dimension_semantics = [#tpu.dimension_semantics<parallel>], iteration_bounds = array<i64: 2>, scalar_prefetch = 0 : i64, scratch_operands = 0 : i64, tpu.core_type = #tpu.core_type<tc>, window_params = [{transform_indices = @transform_0, window_bounds = array<i64: 16, 1>}, {transform_indices = @transform_1, window_bounds = array<i64: 16, 1>}, {pipeline_mode = #tpu.pipeline_mode<synchronous>, transform_indices = @transform_2, window_bounds = array<i64: 512, 26>}, {pipeline_mode = #tpu.pipeline_mode<synchronous>, transform_indices = @transform_3, window_bounds = array<i64: 512, 26>}, {transform_indices = @transform_4, window_bounds = array<i64: 16, 26>}]} {
    %0 = tpu.iota {dimensions = array<i32: 1>} : vector<16x512xi32>
    %c0 = arith.constant 0 : index
    %c0_0 = arith.constant 0 : index
    %1 = vector.load %arg1[%c0, %c0_0] : memref<16x1xi32, #tpu.memory_space<vmem>>, vector<16x1xi32>
    %2 = vector.broadcast %1 : vector<16x1xi32> to vector<16x512xi32>
    %3 = arith.cmpi eq, %0, %2 : vector<16x512xi32>
    %cst = arith.constant 1.000000e+00 : f32
    %cst_1 = arith.constant 0.000000e+00 : f32
    %4 = vector.broadcast %cst : f32 to vector<16x512xf32>
    %5 = vector.broadcast %cst_1 : f32 to vector<16x512xf32>
    %6 = arith.select %3, %4, %5 : vector<16x512xi1>, vector<16x512xf32>
    %7 = arith.truncf %6 : vector<16x512xf32> to vector<16x512xbf16>
    %c0_2 = arith.constant 0 : index
    %c0_3 = arith.constant 0 : index
    %8 = vector.load %arg3[%c0_2, %c0_3] : memref<512x26xbf16, #tpu.memory_space<vmem>>, vector<512x26xbf16>
    %cst_4 = arith.constant dense<0.000000e+00> : vector<16x26xf32>
    %9 = tpu.matmul %7, %8, %cst_4 {dimension_numbers = #tpu.dot_dimension_numbers<[1], [0], [0], [1], [0, 0, 1, 1], [], []>} : vector<16x512xbf16>, vector<512x26xbf16>, vector<16x26xf32> -> vector<16x26xf32>
    %c0_5 = arith.constant 0 : index
    %c0_6 = arith.constant 0 : index
    %10 = vector.load %arg4[%c0_5, %c0_6] : memref<512x26xbf16, #tpu.memory_space<vmem>>, vector<512x26xbf16>
    %cst_7 = arith.constant dense<0.000000e+00> : vector<16x26xf32>
    %11 = tpu.matmul %7, %10, %cst_7 {dimension_numbers = #tpu.dot_dimension_numbers<[1], [0], [0], [1], [0, 0, 1, 1], [], []>} : vector<16x512xbf16>, vector<512x26xbf16>, vector<16x26xf32> -> vector<16x26xf32>
    %12 = arith.addf %9, %11 : vector<16x26xf32>
    %c0_8 = arith.constant 0 : index
    %c0_9 = arith.constant 0 : index
    %13 = vector.load %arg2[%c0_8, %c0_9] : memref<16x1xf32, #tpu.memory_space<vmem>>, vector<16x1xf32>
    %14 = vector.broadcast %13 : vector<16x1xf32> to vector<16x26xf32>
    %15 = arith.mulf %12, %14 : vector<16x26xf32>
    %c0_10 = arith.constant 0 : index
    %c0_11 = arith.constant 0 : index
    %16 = vector.load %arg5[%c0_10, %c0_11] : memref<16x26xf32, #tpu.memory_space<vmem>>, vector<16x26xf32>
    tpu.vector_store %arg5[%c0_10, %c0_11], %15 {strides = array<i32>} : memref<16x26xf32, #tpu.memory_space<vmem>>, vector<16x26xf32>,
    return
  }
  func.func @transform_0(%arg0: i32) -> (i32, i32) {
    %c0_i32 = arith.constant 0 : i32
    %c0_i32_0 = arith.constant 0 : i32
    return %arg0, %c0_i32 : i32, i32
  }
  func.func @transform_1(%arg0: i32) -> (i32, i32) {
    %c0_i32 = arith.constant 0 : i32
    %c0_i32_0 = arith.constant 0 : i32
    return %arg0, %c0_i32 : i32, i32
  }
  func.func @transform_2(%arg0: i32) -> (i32, i32) {
    %c0_i32 = arith.constant 0 : i32
    %c0_i32_0 = arith.constant 0 : i32
    %c0_i32_1 = arith.constant 0 : i32
    return %c0_i32, %c0_i32_0 : i32, i32
  }
  func.func @transform_3(%arg0: i32) -> (i32, i32) {
    %c0_i32 = arith.constant 0 : i32
    %c0_i32_0 = arith.constant 0 : i32
    %c0_i32_1 = arith.constant 0 : i32
    return %c0_i32, %c0_i32_0 : i32, i32
  }
  func.func @transform_4(%arg0: i32) -> (i32, i32) {
    %c0_i32 = arith.constant 0 : i32
    %c0_i32_0 = arith.constant 0 : i32
    return %arg0, %c0_i32 : i32, i32
  }
}

</mosaic_0001>

<llo_original>
// kernel: tpu_custom_call.1
$region0: #{tpu_custom_call.1}
  #allocation0 [shape = 'u32[]', space=smem, size = 0x4, offset = 0x4, fixed_abs, tag = 'smem constant byte address 0x4 - core index']
  #allocation1 [shape = 'u32[72,128]{1,0:T(1,128)}', space=vmem, size = 0x9000, scoped, tag = 'internal scratch']
  %s0 = inlined_call_operand.vmem [shape: s32[32,1], index: 0, kind: input, shape index: {}]
  %s1 = inlined_call_operand.vmem [shape: f32[32,1], index: 1, kind: input, shape index: {}]
  %s2 = inlined_call_operand.vmem [shape: bf16[512,26], index: 2, kind: input, shape index: {}]
  %s3 = inlined_call_operand.vmem [shape: bf16[512,26], index: 3, kind: input, shape index: {}]
  %s4 = inlined_call_operand.hbm [shape: f32[32,26], index: 4, kind: output, shape index: {}]
  %s5 = sld [smem:[#allocation0]]
  $region49: #{tpu_custom_call.1} parent=0
    _
  %s7 = ssub.s32 1, %s5
  %s8 = scalar_select 0, %s7, %s5
  $region1: #{tpu_custom_call.1} parent=0
    #allocation2 [shape = 'u8[16384]{0}', space=vmem, size = 0x4000, scoped, tag = 'output window, operand 0']
    #allocation3 [shape = 's32[2]{0}', space=sflag, size = 0x8, scoped, tag = 'scoped memory for tpu_custom_call.1']
    %9 = vsyncpa [#allocation3], 0
    %s10 = scalar_lea.sflag [#allocation3], 1
    %11 = vsyncpa %s10, 0
    loop: start=0, step=1, limit=4
    $region2: #{tpu_custom_call.1} parent=1 // loop_pre_header
      _
    $region3: #{tpu_custom_call.1} parent=1 // loop_header
      %s13 = sphi 0, %s17
      %p14 = scmp.ge.s32.totalorder %s13, 4
      %s23 = sphi 0, %s25
      %s26 = sphi 0, %s23
      %s27 = sphi 0, %s26
      %s43 = sphi 0, %s27
      %s49 = sphi 0, %s51
      %s52 = sphi 0, %s49
      %s53 = sphi 0, %s52
      %s69 = sphi 0, %s53
      %s73 = sphi 0, %s73
      %s75 = sphi 0, %s73
      %s76 = sphi 0, %s75
      %s90 = sphi 0, %s76
      %s94 = sphi 0, %s94
      %s96 = sphi 0, %s94
      %s97 = sphi 0, %s96
      %s111 = sphi 0, %s97
      %s117 = sphi 0, %s119
      %s120 = sphi 0, %s117
      %s121 = sphi 0, %s120
      %s137 = sphi 0, %s121
    $region4: #{tpu_custom_call.1} parent=1 // loop_header_branch
      %16 = sbr.rel (%p14) target = $region8
    $region5: #{tpu_custom_call.1} parent=1 // loop_body
      %s18 = ssub.s32 %s13, 1
      %s19 = ssub.s32 %s13, 2
      %s20 = sadd.s32 %s13, 1
      %s21 = ssub.s32 %s13, %s20
      %p22 = scmp.eq.s32.totalorder %s21, 0
      %s24 = sadd.s32 %s23, 1
      %s25 = scalar_select %p22, %s23, %s24
      %p28 = pneg %p22
      %p29 = scmp.eq.s32.totalorder %s13, 1
      %p30 = por %p28, %p29
      %p31 = scmp.ne.s32.totalorder %s23, %s26
      %p32 = scmp.eq.s32.totalorder %s13, 0
      %p33 = por %p31, %p32
      %p34 = scmp.ne.s32.totalorder %s23, %s26
      %p35 = scmp.eq.s32.totalorder %s18, 1
      %p36 = por %p34, %p35
      %p37 = scmp.ne.s32.totalorder %s26, %s27
      %p38 = scmp.eq.s32.totalorder %s18, 0
      %p39 = por %p37, %p38
      %p40 = scmp.ne.s32.totalorder %s26, %s27
      %p41 = scmp.eq.s32.totalorder %s19, 1
      %p42 = por %p40, %p41
      %p44 = scmp.ne.s32.totalorder %s27, %s43
      %p45 = scmp.eq.s32.totalorder %s19, 0
      %p46 = por %p44, %p45
      %s47 = ssub.s32 %s13, %s20
      %p48 = scmp.eq.s32.totalorder %s47, 0
      %s50 = sadd.s32 %s49, 1
      %s51 = scalar_select %p48, %s49, %s50
      %p54 = pneg %p48
      %p55 = scmp.eq.s32.totalorder %s13, 1
      %p56 = por %p54, %p55
      %p57 = scmp.ne.s32.totalorder %s49, %s52
      %p58 = scmp.eq.s32.totalorder %s13, 0
      %p59 = por %p57, %p58
      %p60 = scmp.ne.s32.totalorder %s49, %s52
      %p61 = scmp.eq.s32.totalorder %s18, 1
      %p62 = por %p60, %p61
      %p63 = scmp.ne.s32.totalorder %s52, %s53
      %p64 = scmp.eq.s32.totalorder %s18, 0
      %p65 = por %p63, %p64
      %p66 = scmp.ne.s32.totalorder %s52, %s53
      %p67 = scmp.eq.s32.totalorder %s19, 1
      %p68 = por %p66, %p67
      %p70 = scmp.ne.s32.totalorder %s53, %s69
      %p71 = scmp.eq.s32.totalorder %s19, 0
      %p72 = por %p70, %p71
      %s74 = sadd.s32 %s73, 1
      %p77 = scmp.eq.s32.totalorder %s13, 1
      %p78 = scmp.ne.s32.totalorder %s73, %s75
      %p79 = scmp.eq.s32.totalorder %s13, 0
      %p80 = por %p78, %p79
      %p81 = scmp.ne.s32.totalorder %s73, %s75
      %p82 = scmp.eq.s32.totalorder %s18, 1
      %p83 = por %p81, %p82
      %p84 = scmp.ne.s32.totalorder %s75, %s76
      %p85 = scmp.eq.s32.totalorder %s18, 0
      %p86 = por %p84, %p85
      %p87 = scmp.ne.s32.totalorder %s75, %s76
      %p88 = scmp.eq.s32.totalorder %s19, 1
      %p89 = por %p87, %p88
      %p91 = scmp.ne.s32.totalorder %s76, %s90
      %p92 = scmp.eq.s32.totalorder %s19, 0
      %p93 = por %p91, %p92
      %s95 = sadd.s32 %s94, 1
      %p98 = scmp.eq.s32.totalorder %s13, 1
      %p99 = scmp.ne.s32.totalorder %s94, %s96
      %p100 = scmp.eq.s32.totalorder %s13, 0
      %p101 = por %p99, %p100
      %p102 = scmp.ne.s32.totalorder %s94, %s96
      %p103 = scmp.eq.s32.totalorder %s18, 1
      %p104 = por %p102, %p103
      %p105 = scmp.ne.s32.totalorder %s96, %s97
      %p106 = scmp.eq.s32.totalorder %s18, 0
      %p107 = por %p105, %p106
      %p108 = scmp.ne.s32.totalorder %s96, %s97
      %p109 = scmp.eq.s32.totalorder %s19, 1
      %p110 = por %p108, %p109
      %p112 = scmp.ne.s32.totalorder %s97, %s111
      %p113 = scmp.eq.s32.totalorder %s19, 0
      %p114 = por %p112, %p113
      %s115 = ssub.s32 %s13, %s20
      %p116 = scmp.eq.s32.totalorder %s115, 0
      %s118 = sadd.s32 %s117, 1
      %s119 = scalar_select %p116, %s117, %s118
      %p122 = pneg %p116
      %p123 = scmp.eq.s32.totalorder %s13, 1
      %p124 = por %p122, %p123
      %p125 = scmp.ne.s32.totalorder %s117, %s120
      %p126 = scmp.eq.s32.totalorder %s13, 0
      %p127 = por %p125, %p126
      %p128 = scmp.ne.s32.totalorder %s117, %s120
      %p129 = scmp.eq.s32.totalorder %s18, 1
      %p130 = por %p128, %p129
      %p131 = scmp.ne.s32.totalorder %s120, %s121
      %p132 = scmp.eq.s32.totalorder %s18, 0
      %p133 = por %p131, %p132
      %p134 = scmp.ne.s32.totalorder %s120, %s121
      %p135 = scmp.eq.s32.totalorder %s19, 1
      %p136 = por %p134, %p135
      %p138 = scmp.ne.s32.totalorder %s121, %s137
      %p139 = scmp.eq.s32.totalorder %s19, 0
      %p140 = por %p138, %p139
      %p141 = scmp.le.s32.totalorder 1, %s13
      %p142 = scmp.lt.s32.totalorder %s13, 3
      %p143 = pnand %p141, %p142
      %p144 = pneg %p143
      // Predicated region
      $region9: #{tpu_custom_call.1} parent=5 // pred_check
        _
      $region10: #{tpu_custom_call.1} parent=5 // pred_check_branch
        %146 = sbr.rel (%p143) target = $region12
      $region11: #{tpu_custom_call.1} parent=5 // pred_region
        %s147 = ssub.s32 %s13, 1
        // Predicated region
        $region13: #{tpu_custom_call.1} parent=11 // pred_check
          %p148 = pneg %p86
        $region14: #{tpu_custom_call.1} parent=11 // pred_check_branch
          %150 = sbr.rel (%p148) target = $region16
        $region15: #{tpu_custom_call.1} parent=11 // pred_region
          _
        $region16: #{tpu_custom_call.1} parent=11 // pred_fallthru
          _
        // Predicated region
        $region17: #{tpu_custom_call.1} parent=11 // pred_check
          %p151 = pneg %p107
        $region18: #{tpu_custom_call.1} parent=11 // pred_check_branch
          %153 = sbr.rel (%p151) target = $region20
        $region19: #{tpu_custom_call.1} parent=11 // pred_region
          _
        $region20: #{tpu_custom_call.1} parent=11 // pred_fallthru
          _
      $region12: #{tpu_custom_call.1} parent=5 // pred_fallthru
        _
      %p154 = scmp.lt.s32.totalorder %s13, 2
      // Predicated region
      $region21: #{tpu_custom_call.1} parent=5 // pred_check
        %p155 = pneg %p154
      $region22: #{tpu_custom_call.1} parent=5 // pred_check_branch
        %157 = sbr.rel (%p155) target = $region24
      $region23: #{tpu_custom_call.1} parent=5 // pred_region
        // Predicated region
        $region25: #{tpu_custom_call.1} parent=23 // pred_check
          %p158 = pneg %p33
        $region26: #{tpu_custom_call.1} parent=23 // pred_check_branch
          %160 = sbr.rel (%p158) target = $region28
        $region27: #{tpu_custom_call.1} parent=23 // pred_region
          %s161 = smul.u32 2, %s13
          %p162 = scmp.lt.s32.totalorder %s161, 3
          %s163 = scalar_select %p162, %s161, 3
          %s164 = smul.addr %s163, 8
          %s165 = scalar_lea.vmem %s0, %s164
          %s166 = smul.u32 2, %s13
        $region28: #{tpu_custom_call.1} parent=23 // pred_fallthru
          _
        // Predicated region
        $region29: #{tpu_custom_call.1} parent=23 // pred_check
          %p167 = pneg %p59
        $region30: #{tpu_custom_call.1} parent=23 // pred_check_branch
          %169 = sbr.rel (%p167) target = $region32
        $region31: #{tpu_custom_call.1} parent=23 // pred_region
          %s170 = smul.u32 2, %s13
          %p171 = scmp.lt.s32.totalorder %s170, 3
          %s172 = scalar_select %p171, %s170, 3
          %s173 = smul.addr %s172, 8
          %s174 = scalar_lea.vmem %s1, %s173
          %s175 = smul.u32 2, %s13
        $region32: #{tpu_custom_call.1} parent=23 // pred_fallthru
          _
      $region24: #{tpu_custom_call.1} parent=5 // pred_fallthru
        _
      %p176 = scmp.le.s32.totalorder 1, %s13
      %p177 = scmp.lt.s32.totalorder %s13, 3
      %p178 = pnand %p176, %p177
      %p179 = pneg %p178
      // Predicated region
      $region33: #{tpu_custom_call.1} parent=5 // pred_check
        _
      $region34: #{tpu_custom_call.1} parent=5 // pred_check_branch
        %181 = sbr.rel (%p178) target = $region36
      $region35: #{tpu_custom_call.1} parent=5 // pred_region
        %s182 = ssub.s32 %s13, 1
        %s183 = smul.u32 2, %s18
        %p184 = scmp.lt.s32.totalorder %s183, 3
        %s185 = scalar_select %p184, %s183, 3
        %s186 = smul.addr %s185, 8
        %s187 = scalar_lea.vmem %s0, %s186
        %p188 = pneg %p39
        %p189 = pneg %p36
        %s190 = smul.u32 2, %s18
        %p191 = scmp.lt.s32.totalorder %s190, 3
        %s192 = scalar_select %p191, %s190, 3
        %s193 = smul.addr %s192, 8
        %s194 = scalar_lea.vmem %s1, %s193
        %p195 = pneg %p65
        %p196 = pneg %p62
        %p197 = pneg %p86
        %p198 = pneg %p83
        %p199 = pneg %p107
        %p200 = pneg %p104
        %p201 = pneg %p133
        %p202 = pneg %p130
        %s203 = sand.u32 %s120, 1
        %s204 = scalar_lea.sflag [#allocation3], %s203
        %s205 = sand.u32 %s120, 1
        %s206 = smul.addr %s205, 16
        %s207 = scalar_lea.vmem [#allocation2], %s206
        %s208 = smul.u32 2, %s18
        %p209 = scmp.lt.s32.totalorder %s208, 3
        %s210 = scalar_select %p209, %s208, 3
        %s211 = smul.addr %s210, 8
        %s212 = scalar_lea.vmem %s0, %s211
        %s213 = smul.u32 2, %s18
        %s214 = smul.u32 2, %s18
        %p215 = scmp.lt.s32.totalorder %s214, 3
        %s216 = scalar_select %p215, %s214, 3
        %s217 = smul.addr %s216, 8
        %s218 = scalar_lea.vmem %s1, %s217
        %s219 = smul.u32 2, %s18
        %s220 = smul.u32 2, %s18
        %v221 = vlaneseq
        %v222 = vand.u32 %v221, 127
        %v223 = vadd.s32 %v222, 128
        %v224 = vadd.s32 %v222, 256
        %v225 = vadd.s32 %v222, 384
        %v226 = vld [vmem:[%s212] sm:$0xff]
        %v227 = vld [vmem:[%s212 + $0x8] sm:$0xff]
        %228 = vset.pattern.permute.xlu0 0
        %229 = vperm.xlu0 %228, %v226
        %v230 = vpop.permute.xlu0 %229
        %231 = vset.pattern.permute.xlu0 0
        %232 = vperm.xlu0 %231, %v227
        %v233 = vpop.permute.xlu0 %232
        %vm234 = vcmp.eq.s32.totalorder %v222, %v230
        %vm235 = vcmp.eq.s32.totalorder %v223, %v230
        %vm236 = vcmp.eq.s32.totalorder %v224, %v230
        %vm237 = vcmp.eq.s32.totalorder %v225, %v230
        %vm238 = vcmp.eq.s32.totalorder %v222, %v233
        %vm239 = vcmp.eq.s32.totalorder %v223, %v233
        %vm240 = vcmp.eq.s32.totalorder %v224, %v233
        %vm241 = vcmp.eq.s32.totalorder %v225, %v233
        %v242 = vsel %vm234, 1.0, 0.0
        %v243 = vsel %vm235, 1.0, 0.0
        %v244 = vsel %vm236, 1.0, 0.0
        %v245 = vsel %vm237, 1.0, 0.0
        %v246 = vsel %vm238, 1.0, 0.0
        %v247 = vsel %vm239, 1.0, 0.0
        %v248 = vsel %vm240, 1.0, 0.0
        %v249 = vsel %vm241, 1.0, 0.0
        %v250 = vpack.c.bf16 %v246, %v242
        %v251 = vpack.c.bf16 %v247, %v243
        %v252 = vpack.c.bf16 %v248, %v244
        %v253 = vpack.c.bf16 %v249, %v245
        %v254 = vld [vmem:[%s2] sm:$0xf]
        %v255 = vld [vmem:[%s2 + $0x4] sm:$0xf]
        %v256 = vld [vmem:[%s2 + $0x8] sm:$0xf]
        %v257 = vld [vmem:[%s2 + $0xc] sm:$0xf]
        %v258 = vld [vmem:[%s2 + $0x10] sm:$0xf]
        %v259 = vld [vmem:[%s2 + $0x14] sm:$0xf]
        %v260 = vld [vmem:[%s2 + $0x18] sm:$0xf]
        %v261 = vld [vmem:[%s2 + $0x1c] sm:$0xf]
        %v262 = vld [vmem:[%s2 + $0x20] sm:$0xf]
        %v263 = vld [vmem:[%s2 + $0x24] sm:$0xf]
        %v264 = vld [vmem:[%s2 + $0x28] sm:$0xf]
        %v265 = vld [vmem:[%s2 + $0x2c] sm:$0xf]
        %v266 = vld [vmem:[%s2 + $0x30] sm:$0xf]
        %v267 = vld [vmem:[%s2 + $0x34] sm:$0xf]
        %v268 = vld [vmem:[%s2 + $0x38] sm:$0xf]
        %v269 = vld [vmem:[%s2 + $0x3c] sm:$0xf]
        %v270 = vld [vmem:[%s2 + $0x40] sm:$0xf]
        %v271 = vld [vmem:[%s2 + $0x44] sm:$0xf]
        %v272 = vld [vmem:[%s2 + $0x48] sm:$0xf]
        %v273 = vld [vmem:[%s2 + $0x4c] sm:$0xf]
        %v274 = vld [vmem:[%s2 + $0x50] sm:$0xf]
        %v275 = vld [vmem:[%s2 + $0x54] sm:$0xf]
        %v276 = vld [vmem:[%s2 + $0x58] sm:$0xf]
        %v277 = vld [vmem:[%s2 + $0x5c] sm:$0xf]
        %v278 = vld [vmem:[%s2 + $0x60] sm:$0xf]
        %v279 = vld [vmem:[%s2 + $0x64] sm:$0xf]
        %v280 = vld [vmem:[%s2 + $0x68] sm:$0xf]
        %v281 = vld [vmem:[%s2 + $0x6c] sm:$0xf]
        %v282 = vld [vmem:[%s2 + $0x70] sm:$0xf]
        %v283 = vld [vmem:[%s2 + $0x74] sm:$0xf]
        %v284 = vld [vmem:[%s2 + $0x78] sm:$0xf]
        %v285 = vld [vmem:[%s2 + $0x7c] sm:$0xf]
        %v286 = vld [vmem:[%s2 + $0x80] sm:$0xf]
        %v287 = vld [vmem:[%s2 + $0x84] sm:$0xf]
        %v288 = vld [vmem:[%s2 + $0x88] sm:$0xf]
        %v289 = vld [vmem:[%s2 + $0x8c] sm:$0xf]
        %v290 = vld [vmem:[%s2 + $0x90] sm:$0xf]
        %v291 = vld [vmem:[%s2 + $0x94] sm:$0xf]
        %v292 = vld [vmem:[%s2 + $0x98] sm:$0xf]
        %v293 = vld [vmem:[%s2 + $0x9c] sm:$0xf]
        %v294 = vld [vmem:[%s2 + $0xa0] sm:$0xf]
        %v295 = vld [vmem:[%s2 + $0xa4] sm:$0xf]
        %v296 = vld [vmem:[%s2 + $0xa8] sm:$0xf]
        %v297 = vld [vmem:[%s2 + $0xac] sm:$0xf]
        %v298 = vld [vmem:[%s2 + $0xb0] sm:$0xf]
        %v299 = vld [vmem:[%s2 + $0xb4] sm:$0xf]
        %v300 = vld [vmem:[%s2 + $0xb8] sm:$0xf]
        %v301 = vld [vmem:[%s2 + $0xbc] sm:$0xf]
        %v302 = vld [vmem:[%s2 + $0xc0] sm:$0xf]
        %v303 = vld [vmem:[%s2 + $0xc4] sm:$0xf]
        %v304 = vld [vmem:[%s2 + $0xc8] sm:$0xf]
        %v305 = vld [vmem:[%s2 + $0xcc] sm:$0xf]
        %v306 = vld [vmem:[%s2 + $0xd0] sm:$0xf]
        %v307 = vld [vmem:[%s2 + $0xd4] sm:$0xf]
        %v308 = vld [vmem:[%s2 + $0xd8] sm:$0xf]
        %v309 = vld [vmem:[%s2 + $0xdc] sm:$0xf]
        %v310 = vld [vmem:[%s2 + $0xe0] sm:$0xf]
        %v311 = vld [vmem:[%s2 + $0xe4] sm:$0xf]
        %v312 = vld [vmem:[%s2 + $0xe8] sm:$0xf]
        %v313 = vld [vmem:[%s2 + $0xec] sm:$0xf]
        %v314 = vld [vmem:[%s2 + $0xf0] sm:$0xf]
        %v315 = vld [vmem:[%s2 + $0xf4] sm:$0xf]
        %v316 = vld [vmem:[%s2 + $0xf8] sm:$0xf]
        %v317 = vld [vmem:[%s2 + $0xfc] sm:$0xf]
        %v318 = vld [vmem:[%s3] sm:$0xf]
        %v319 = vld [vmem:[%s3 + $0x4] sm:$0xf]
        %v320 = vld [vmem:[%s3 + $0x8] sm:$0xf]
        %v321 = vld [vmem:[%s3 + $0xc] sm:$0xf]
        %v322 = vld [vmem:[%s3 + $0x10] sm:$0xf]
        %v323 = vld [vmem:[%s3 + $0x14] sm:$0xf]
        %v324 = vld [vmem:[%s3 + $0x18] sm:$0xf]
        %v325 = vld [vmem:[%s3 + $0x1c] sm:$0xf]
        %v326 = vld [vmem:[%s3 + $0x20] sm:$0xf]
        %v327 = vld [vmem:[%s3 + $0x24] sm:$0xf]
        %v328 = vld [vmem:[%s3 + $0x28] sm:$0xf]
        %v329 = vld [vmem:[%s3 + $0x2c] sm:$0xf]
        %v330 = vld [vmem:[%s3 + $0x30] sm:$0xf]
        %v331 = vld [vmem:[%s3 + $0x34] sm:$0xf]
        %v332 = vld [vmem:[%s3 + $0x38] sm:$0xf]
        %v333 = vld [vmem:[%s3 + $0x3c] sm:$0xf]
        %v334 = vld [vmem:[%s3 + $0x40] sm:$0xf]
        %v335 = vld [vmem:[%s3 + $0x44] sm:$0xf]
        %v336 = vld [vmem:[%s3 + $0x48] sm:$0xf]
        %v337 = vld [vmem:[%s3 + $0x4c] sm:$0xf]
        %v338 = vld [vmem:[%s3 + $0x50] sm:$0xf]
        %v339 = vld [vmem:[%s3 + $0x54] sm:$0xf]
        %v340 = vld [vmem:[%s3 + $0x58] sm:$0xf]
        %v341 = vld [vmem:[%s3 + $0x5c] sm:$0xf]
        %v342 = vld [vmem:[%s3 + $0x60] sm:$0xf]
        %v343 = vld [vmem:[%s3 + $0x64] sm:$0xf]
        %v344 = vld [vmem:[%s3 + $0x68] sm:$0xf]
        %v345 = vld [vmem:[%s3 + $0x6c] sm:$0xf]
        %v346 = vld [vmem:[%s3 + $0x70] sm:$0xf]
        %v347 = vld [vmem:[%s3 + $0x74] sm:$0xf]
        %v348 = vld [vmem:[%s3 + $0x78] sm:$0xf]
        %v349 = vld [vmem:[%s3 + $0x7c] sm:$0xf]
        %v350 = vld [vmem:[%s3 + $0x80] sm:$0xf]
        %v351 = vld [vmem:[%s3 + $0x84] sm:$0xf]
        %v352 = vld [vmem:[%s3 + $0x88] sm:$0xf]
        %v353 = vld [vmem:[%s3 + $0x8c] sm:$0xf]
        %v354 = vld [vmem:[%s3 + $0x90] sm:$0xf]
        %v355 = vld [vmem:[%s3 + $0x94] sm:$0xf]
        %v356 = vld [vmem:[%s3 + $0x98] sm:$0xf]
        %v357 = vld [vmem:[%s3 + $0x9c] sm:$0xf]
        %v358 = vld [vmem:[%s3 + $0xa0] sm:$0xf]
        %v359 = vld [vmem:[%s3 + $0xa4] sm:$0xf]
        %v360 = vld [vmem:[%s3 + $0xa8] sm:$0xf]
        %v361 = vld [vmem:[%s3 + $0xac] sm:$0xf]
        %v362 = vld [vmem:[%s3 + $0xb0] sm:$0xf]
        %v363 = vld [vmem:[%s3 + $0xb4] sm:$0xf]
        %v364 = vld [vmem:[%s3 + $0xb8] sm:$0xf]
        %v365 = vld [vmem:[%s3 + $0xbc] sm:$0xf]
        %v366 = vld [vmem:[%s3 + $0xc0] sm:$0xf]
        %v367 = vld [vmem:[%s3 + $0xc4] sm:$0xf]
        %v368 = vld [vmem:[%s3 + $0xc8] sm:$0xf]
        %v369 = vld [vmem:[%s3 + $0xcc] sm:$0xf]
        %v370 = vld [vmem:[%s3 + $0xd0] sm:$0xf]
        %v371 = vld [vmem:[%s3 + $0xd4] sm:$0xf]
        %v372 = vld [vmem:[%s3 + $0xd8] sm:$0xf]
        %v373 = vld [vmem:[%s3 + $0xdc] sm:$0xf]
        %v374 = vld [vmem:[%s3 + $0xe0] sm:$0xf]
        %v375 = vld [vmem:[%s3 + $0xe4] sm:$0xf]
        %v376 = vld [vmem:[%s3 + $0xe8] sm:$0xf]
        %v377 = vld [vmem:[%s3 + $0xec] sm:$0xf]
        %v378 = vld [vmem:[%s3 + $0xf0] sm:$0xf]
        %v379 = vld [vmem:[%s3 + $0xf4] sm:$0xf]
        %v380 = vld [vmem:[%s3 + $0xf8] sm:$0xf]
        %v381 = vld [vmem:[%s3 + $0xfc] sm:$0xf]
        %v446 = vunpack.c.l.b16 %v318
        %v447 = vunpack.c.l.b16 %v319
        %v448 = vunpack.c.l.b16 %v320
        %v449 = vunpack.c.l.b16 %v321
        %v450 = vunpack.c.l.b16 %v322
        %v451 = vunpack.c.l.b16 %v323
        %v452 = vunpack.c.l.b16 %v324
        %v453 = vunpack.c.l.b16 %v325
        %v454 = vunpack.c.l.b16 %v326
        %v455 = vunpack.c.l.b16 %v327
        %v456 = vunpack.c.l.b16 %v328
        %v457 = vunpack.c.l.b16 %v329
        %v458 = vunpack.c.l.b16 %v330
        %v459 = vunpack.c.l.b16 %v331
        %v460 = vunpack.c.l.b16 %v332
        %v461 = vunpack.c.l.b16 %v333
        %v462 = vunpack.c.l.b16 %v334
        %v463 = vunpack.c.l.b16 %v335
        %v464 = vunpack.c.l.b16 %v336
        %v465 = vunpack.c.l.b16 %v337
        %v466 = vunpack.c.l.b16 %v338
        %v467 = vunpack.c.l.b16 %v339
        %v468 = vunpack.c.l.b16 %v340
        %v469 = vunpack.c.l.b16 %v341
        %v470 = vunpack.c.l.b16 %v342
        %v471 = vunpack.c.l.b16 %v343
        %v472 = vunpack.c.l.b16 %v344
        %v473 = vunpack.c.l.b16 %v345
        %v474 = vunpack.c.l.b16 %v346
        %v475 = vunpack.c.l.b16 %v347
        %v476 = vunpack.c.l.b16 %v348
        %v477 = vunpack.c.l.b16 %v349
        %v478 = vunpack.c.l.b16 %v350
        %v479 = vunpack.c.l.b16 %v351
        %v480 = vunpack.c.l.b16 %v352
        %v481 = vunpack.c.l.b16 %v353
        %v482 = vunpack.c.l.b16 %v354
        %v483 = vunpack.c.l.b16 %v355
        %v484 = vunpack.c.l.b16 %v356
        %v485 = vunpack.c.l.b16 %v357
        %v486 = vunpack.c.l.b16 %v358
        %v487 = vunpack.c.l.b16 %v359
        %v488 = vunpack.c.l.b16 %v360
        %v489 = vunpack.c.l.b16 %v361
        %v490 = vunpack.c.l.b16 %v362
        %v491 = vunpack.c.l.b16 %v363
        %v492 = vunpack.c.l.b16 %v364
        %v493 = vunpack.c.l.b16 %v365
        %v494 = vunpack.c.l.b16 %v366
        %v495 = vunpack.c.l.b16 %v367
        %v496 = vunpack.c.l.b16 %v368
        %v497 = vunpack.c.l.b16 %v369
        %v498 = vunpack.c.l.b16 %v370
        %v499 = vunpack.c.l.b16 %v371
        %v500 = vunpack.c.l.b16 %v372
        %v501 = vunpack.c.l.b16 %v373
        %v502 = vunpack.c.l.b16 %v374
        %v503 = vunpack.c.l.b16 %v375
        %v504 = vunpack.c.l.b16 %v376
        %v505 = vunpack.c.l.b16 %v377
        %v506 = vunpack.c.l.b16 %v378
        %v507 = vunpack.c.l.b16 %v379
        %v508 = vunpack.c.l.b16 %v380
        %v509 = vunpack.c.l.b16 %v381
        %v510 = vpack.c.b16 %v447, %v446
        %v511 = vpack.c.b16 %v449, %v448
        %v512 = vpack.c.b16 %v451, %v450
        %v513 = vpack.c.b16 %v453, %v452
        %v514 = vpack.c.b16 %v455, %v454
        %v515 = vpack.c.b16 %v457, %v456
        %v516 = vpack.c.b16 %v459, %v458
        %v517 = vpack.c.b16 %v461, %v460
        %v518 = vpack.c.b16 %v463, %v462
        %v519 = vpack.c.b16 %v465, %v464
        %v520 = vpack.c.b16 %v467, %v466
        %v521 = vpack.c.b16 %v469, %v468
        %v522 = vpack.c.b16 %v471, %v470
        %v523 = vpack.c.b16 %v473, %v472
        %v524 = vpack.c.b16 %v475, %v474
        %v525 = vpack.c.b16 %v477, %v476
        %v526 = vpack.c.b16 %v479, %v478
        %v527 = vpack.c.b16 %v481, %v480
        %v528 = vpack.c.b16 %v483, %v482
        %v529 = vpack.c.b16 %v485, %v484
        %v530 = vpack.c.b16 %v487, %v486
        %v531 = vpack.c.b16 %v489, %v488
        %v532 = vpack.c.b16 %v491, %v490
        %v533 = vpack.c.b16 %v493, %v492
        %v534 = vpack.c.b16 %v495, %v494
        %v535 = vpack.c.b16 %v497, %v496
        %v536 = vpack.c.b16 %v499, %v498
        %v537 = vpack.c.b16 %v501, %v500
        %v538 = vpack.c.b16 %v503, %v502
        %v539 = vpack.c.b16 %v505, %v504
        %v540 = vpack.c.b16 %v507, %v506
        %v541 = vpack.c.b16 %v509, %v508
        %574 = vmatpush.bf16.msra.mxu0 %v517
        %575 = vmatpush.bf16.msra.mxu0 %v516
        %576 = vmatpush.bf16.msra.mxu0 %v515
        %577 = vmatpush.bf16.msra.mxu0 %v514
        %578 = vmatpush.bf16.msra.mxu0 %v513
        %579 = vmatpush.bf16.msra.mxu0 %v512
        %580 = vmatpush.bf16.msra.mxu0 %v511
        %581 = vmatpush.bf16.msra.mxu0 %v510
        %582 = vmatmul.bf16.gmra.mxu0 %v250
        %v583 = vpop.f32.mrf.mxu0
        %v584 = vadd.f32 0.0, %v583
        %v585 = vpop.f32.mrf.mxu0
        %v586 = vadd.f32 0.0, %v585
        %587 = vdwg.mxu0
        %588 = vmatpush.bf16.msra.mxu0 %v525
        %589 = vmatpush.bf16.msra.mxu0 %v524
        %590 = vmatpush.bf16.msra.mxu0 %v523
        %591 = vmatpush.bf16.msra.mxu0 %v522
        %592 = vmatpush.bf16.msra.mxu0 %v521
        %593 = vmatpush.bf16.msra.mxu0 %v520
        %594 = vmatpush.bf16.msra.mxu0 %v519
        %595 = vmatpush.bf16.msra.mxu0 %v518
        %596 = vmatmul.bf16.gmra.mxu0 %v251
        %v597 = vpop.f32.mrf.mxu0
        %v598 = vadd.f32 %v584, %v597
        %v599 = vpop.f32.mrf.mxu0
        %v600 = vadd.f32 %v586, %v599
        %601 = vdwg.mxu0
        %602 = vmatpush.bf16.msra.mxu0 %v533
        %603 = vmatpush.bf16.msra.mxu0 %v532
        %604 = vmatpush.bf16.msra.mxu0 %v531
        %605 = vmatpush.bf16.msra.mxu0 %v530
        %606 = vmatpush.bf16.msra.mxu0 %v529
        %607 = vmatpush.bf16.msra.mxu0 %v528
        %608 = vmatpush.bf16.msra.mxu0 %v527
        %609 = vmatpush.bf16.msra.mxu0 %v526
        %610 = vmatmul.bf16.gmra.mxu0 %v252
        %v611 = vpop.f32.mrf.mxu0
        %v612 = vadd.f32 %v598, %v611
        %v613 = vpop.f32.mrf.mxu0
        %v614 = vadd.f32 %v600, %v613
        %615 = vdwg.mxu0
        %616 = vmatpush.bf16.msra.mxu0 %v541
        %617 = vmatpush.bf16.msra.mxu0 %v540
        %618 = vmatpush.bf16.msra.mxu0 %v539
        %619 = vmatpush.bf16.msra.mxu0 %v538
        %620 = vmatpush.bf16.msra.mxu0 %v537
        %621 = vmatpush.bf16.msra.mxu0 %v536
        %622 = vmatpush.bf16.msra.mxu0 %v535
        %623 = vmatpush.bf16.msra.mxu0 %v534
        %624 = vmatmul.bf16.gmra.mxu0 %v253
        %v625 = vpop.f32.mrf.mxu0
        %v626 = vadd.f32 %v612, %v625
        %v627 = vpop.f32.mrf.mxu0
        %v628 = vadd.f32 %v614, %v627
        %629 = vdwg.mxu0
        %v694 = vunpack.c.l.b16 %v254
        %v695 = vunpack.c.l.b16 %v255
        %v696 = vunpack.c.l.b16 %v256
        %v697 = vunpack.c.l.b16 %v257
        %v698 = vunpack.c.l.b16 %v258
        %v699 = vunpack.c.l.b16 %v259
        %v700 = vunpack.c.l.b16 %v260
        %v701 = vunpack.c.l.b16 %v261
        %v702 = vunpack.c.l.b16 %v262
        %v703 = vunpack.c.l.b16 %v263
        %v704 = vunpack.c.l.b16 %v264
        %v705 = vunpack.c.l.b16 %v265
        %v706 = vunpack.c.l.b16 %v266
        %v707 = vunpack.c.l.b16 %v267
        %v708 = vunpack.c.l.b16 %v268
        %v709 = vunpack.c.l.b16 %v269
        %v710 = vunpack.c.l.b16 %v270
        %v711 = vunpack.c.l.b16 %v271
        %v712 = vunpack.c.l.b16 %v272
        %v713 = vunpack.c.l.b16 %v273
        %v714 = vunpack.c.l.b16 %v274
        %v715 = vunpack.c.l.b16 %v275
        %v716 = vunpack.c.l.b16 %v276
        %v717 = vunpack.c.l.b16 %v277
        %v718 = vunpack.c.l.b16 %v278
        %v719 = vunpack.c.l.b16 %v279
        %v720 = vunpack.c.l.b16 %v280
        %v721 = vunpack.c.l.b16 %v281
        %v722 = vunpack.c.l.b16 %v282
        %v723 = vunpack.c.l.b16 %v283
        %v724 = vunpack.c.l.b16 %v284
        %v725 = vunpack.c.l.b16 %v285
        %v726 = vunpack.c.l.b16 %v286
        %v727 = vunpack.c.l.b16 %v287
        %v728 = vunpack.c.l.b16 %v288
        %v729 = vunpack.c.l.b16 %v289
        %v730 = vunpack.c.l.b16 %v290
        %v731 = vunpack.c.l.b16 %v291
        %v732 = vunpack.c.l.b16 %v292
        %v733 = vunpack.c.l.b16 %v293
        %v734 = vunpack.c.l.b16 %v294
        %v735 = vunpack.c.l.b16 %v295
        %v736 = vunpack.c.l.b16 %v296
        %v737 = vunpack.c.l.b16 %v297
        %v738 = vunpack.c.l.b16 %v298
        %v739 = vunpack.c.l.b16 %v299
        %v740 = vunpack.c.l.b16 %v300
        %v741 = vunpack.c.l.b16 %v301
        %v742 = vunpack.c.l.b16 %v302
        %v743 = vunpack.c.l.b16 %v303
        %v744 = vunpack.c.l.b16 %v304
        %v745 = vunpack.c.l.b16 %v305
        %v746 = vunpack.c.l.b16 %v306
        %v747 = vunpack.c.l.b16 %v307
        %v748 = vunpack.c.l.b16 %v308
        %v749 = vunpack.c.l.b16 %v309
        %v750 = vunpack.c.l.b16 %v310
        %v751 = vunpack.c.l.b16 %v311
        %v752 = vunpack.c.l.b16 %v312
        %v753 = vunpack.c.l.b16 %v313
        %v754 = vunpack.c.l.b16 %v314
        %v755 = vunpack.c.l.b16 %v315
        %v756 = vunpack.c.l.b16 %v316
        %v757 = vunpack.c.l.b16 %v317
        %v758 = vpack.c.b16 %v695, %v694
        %v759 = vpack.c.b16 %v697, %v696
        %v760 = vpack.c.b16 %v699, %v698
        %v761 = vpack.c.b16 %v701, %v700
        %v762 = vpack.c.b16 %v703, %v702
        %v763 = vpack.c.b16 %v705, %v704
        %v764 = vpack.c.b16 %v707, %v706
        %v765 = vpack.c.b16 %v709, %v708
        %v766 = vpack.c.b16 %v711, %v710
        %v767 = vpack.c.b16 %v713, %v712
        %v768 = vpack.c.b16 %v715, %v714
        %v769 = vpack.c.b16 %v717, %v716
        %v770 = vpack.c.b16 %v719, %v718
        %v771 = vpack.c.b16 %v721, %v720
        %v772 = vpack.c.b16 %v723, %v722
        %v773 = vpack.c.b16 %v725, %v724
        %v774 = vpack.c.b16 %v727, %v726
        %v775 = vpack.c.b16 %v729, %v728
        %v776 = vpack.c.b16 %v731, %v730
        %v777 = vpack.c.b16 %v733, %v732
        %v778 = vpack.c.b16 %v735, %v734
        %v779 = vpack.c.b16 %v737, %v736
        %v780 = vpack.c.b16 %v739, %v738
        %v781 = vpack.c.b16 %v741, %v740
        %v782 = vpack.c.b16 %v743, %v742
        %v783 = vpack.c.b16 %v745, %v744
        %v784 = vpack.c.b16 %v747, %v746
        %v785 = vpack.c.b16 %v749, %v748
        %v786 = vpack.c.b16 %v751, %v750
        %v787 = vpack.c.b16 %v753, %v752
        %v788 = vpack.c.b16 %v755, %v754
        %v789 = vpack.c.b16 %v757, %v756
        %822 = vmatpush.bf16.msra.mxu0 %v765
        %823 = vmatpush.bf16.msra.mxu0 %v764
        %824 = vmatpush.bf16.msra.mxu0 %v763
        %825 = vmatpush.bf16.msra.mxu0 %v762
        %826 = vmatpush.bf16.msra.mxu0 %v761
        %827 = vmatpush.bf16.msra.mxu0 %v760
        %828 = vmatpush.bf16.msra.mxu0 %v759
        %829 = vmatpush.bf16.msra.mxu0 %v758
        %830 = vmatmul.bf16.gmra.mxu0 %v250
        %v831 = vpop.f32.mrf.mxu0
        %v832 = vadd.f32 %v626, %v831
        %v833 = vpop.f32.mrf.mxu0
        %v834 = vadd.f32 %v628, %v833
        %835 = vdwg.mxu0
        %836 = vmatpush.bf16.msra.mxu0 %v773
        %837 = vmatpush.bf16.msra.mxu0 %v772
        %838 = vmatpush.bf16.msra.mxu0 %v771
        %839 = vmatpush.bf16.msra.mxu0 %v770
        %840 = vmatpush.bf16.msra.mxu0 %v769
        %841 = vmatpush.bf16.msra.mxu0 %v768
        %842 = vmatpush.bf16.msra.mxu0 %v767
        %843 = vmatpush.bf16.msra.mxu0 %v766
        %844 = vmatmul.bf16.gmra.mxu0 %v251
        %v845 = vpop.f32.mrf.mxu0
        %v846 = vadd.f32 %v832, %v845
        %v847 = vpop.f32.mrf.mxu0
        %v848 = vadd.f32 %v834, %v847
        %849 = vdwg.mxu0
        %850 = vmatpush.bf16.msra.mxu0 %v781
        %851 = vmatpush.bf16.msra.mxu0 %v780
        %852 = vmatpush.bf16.msra.mxu0 %v779
        %853 = vmatpush.bf16.msra.mxu0 %v778
        %854 = vmatpush.bf16.msra.mxu0 %v777
        %855 = vmatpush.bf16.msra.mxu0 %v776
        %856 = vmatpush.bf16.msra.mxu0 %v775
        %857 = vmatpush.bf16.msra.mxu0 %v774
        %858 = vmatmul.bf16.gmra.mxu0 %v252
        %v859 = vpop.f32.mrf.mxu0
        %v860 = vadd.f32 %v846, %v859
        %v861 = vpop.f32.mrf.mxu0
        %v862 = vadd.f32 %v848, %v861
        %863 = vdwg.mxu0
        %864 = vmatpush.bf16.msra.mxu0 %v789
        %865 = vmatpush.bf16.msra.mxu0 %v788
        %866 = vmatpush.bf16.msra.mxu0 %v787
        %867 = vmatpush.bf16.msra.mxu0 %v786
        %868 = vmatpush.bf16.msra.mxu0 %v785
        %869 = vmatpush.bf16.msra.mxu0 %v784
        %870 = vmatpush.bf16.msra.mxu0 %v783
        %871 = vmatpush.bf16.msra.mxu0 %v782
        %872 = vmatmul.bf16.gmra.mxu0 %v253
        %v873 = vpop.f32.mrf.mxu0
        %v874 = vadd.f32 %v860, %v873
        %v875 = vpop.f32.mrf.mxu0
        %v876 = vadd.f32 %v862, %v875
        %877 = vdwg.mxu0
        %v878 = vld [vmem:[%s218] sm:$0xff]
        %v879 = vld [vmem:[%s218 + $0x8] sm:$0xff]
        %881 = vset.pattern.permute.xlu0 0
        %882 = vperm.xlu0 %881, %v878
        %v883 = vpop.permute.xlu0 %882
        %886 = vset.pattern.permute.xlu0 0
        %887 = vperm.xlu0 %886, %v879
        %v888 = vpop.permute.xlu0 %887
        %v890 = vmul.f32 %v874, %v883
        %v891 = vmul.f32 %v876, %v888
        %vm892 = vcmask 211968
        %893 = vst.msk [vmem:[%s207] sm:$0xff] %vm892, %v890
        %894 = vst.msk [vmem:[%s207 + $0x8] sm:$0xff] %vm892, %v891
        %s895 = sand.u32 %s120, 1
        %s896 = scalar_lea.sflag [#allocation3], %s895
        %s897 = sand.u32 %s120, 1
        %s898 = smul.addr %s897, 16
        %s899 = scalar_lea.vmem [#allocation2], %s898
        // Predicated region
        $region37: #{tpu_custom_call.1} parent=35 // pred_check
          %p900 = pneg %p130
        $region38: #{tpu_custom_call.1} parent=35 // pred_check_branch
          %902 = sbr.rel (%p900) target = $region40
        $region39: #{tpu_custom_call.1} parent=35 // pred_region
          %s903 = smul.u32 2, %s18
          %905 = vsyncadd %s896, 0
          %s906 = smul.addr %s903, 8
          %s907 = scalar_lea.hbm %s4, %s906
          %s908 = sshll.u32 %s899, 4
          %s909 = int_to_ptr.vmem [resolvable:$true] %s908
          %s910 = sshll.u32 %s907, 4
          %s911 = int_to_ptr.hbm [resolvable:$true] %s910
          %916 = dma.vmem_to_hbm [thread:$0]  %s909, 256, %s911, %s896, 128, 128, 8
        $region40: #{tpu_custom_call.1} parent=35 // pred_fallthru
          _
      $region36: #{tpu_custom_call.1} parent=5 // pred_fallthru
        _
      %p917 = scmp.le.s32.totalorder 2, %s13
      // Predicated region
      $region41: #{tpu_custom_call.1} parent=5 // pred_check
        %p918 = pneg %p917
      $region42: #{tpu_custom_call.1} parent=5 // pred_check_branch
        %920 = sbr.rel (%p918) target = $region44
      $region43: #{tpu_custom_call.1} parent=5 // pred_region
        %s921 = ssub.s32 %s13, 2
        // Predicated region
        $region45: #{tpu_custom_call.1} parent=43 // pred_check
          %p922 = pneg %p136
        $region46: #{tpu_custom_call.1} parent=43 // pred_check_branch
          %924 = sbr.rel (%p922) target = $region48
        $region47: #{tpu_custom_call.1} parent=43 // pred_region
          %s925 = sand.u32 %s121, 1
          %s926 = scalar_lea.sflag [#allocation3], %s925
          %s927 = sand.u32 %s121, 1
          %s928 = smul.addr %s927, 16
          %s929 = scalar_lea.vmem [#allocation2], %s928
          %931 = dma.done %s926, 256
        $region48: #{tpu_custom_call.1} parent=43 // pred_fallthru
          _
      $region44: #{tpu_custom_call.1} parent=5 // pred_fallthru
        _
    $region6: #{tpu_custom_call.1} parent=1 // loop_footer
      %s17 = sadd.s32 1, %s13
    $region7: #{tpu_custom_call.1} parent=1 // loop_footer_branch
      %12 = sbr.rel target = $region3
    $region8: #{tpu_custom_call.1} parent=1 // loop_exit
      _
    %932 = vsyncpa [#allocation3], 1
    %s933 = scalar_lea.sflag [#allocation3], 1
    %934 = vsyncpa %s933, 1

</llo_original>
